<compile_context>
chip_gen: v6e
topology: v6e:2x2x1
jax: 0.10.0
libtpu: 0.0.40
codegen_flags: <defaults>
</compile_context>

<pallas_src>
import functools

import jax
import jax.numpy as jnp
from jax import lax
from jax.experimental import pallas as pl
from jax.experimental.pallas import tpu as pltpu


def _bpr_kernel(
    u_idx_ref, i_idx_ref, j_idx_ref,      # scalar-prefetch index vectors (SMEM)
    w_ref, h_ref,                         # full embedding tables (VMEM)
    out_ref,                              # (1, 1, 1) per-core partial loss
    u_buf, i_buf, j_buf,                  # (tile, D) VMEM gather scratch
    *, batch, tile, weight_decay,
):
    c = pl.program_id(0)                  # core / partition index ("parallel")
    g = pl.program_id(1)                  # batch-tile index ("arbitrary")
    steps_per_core = pl.num_programs(1)

    @pl.when(g == 0)
    def _():
        out_ref[...] = jnp.zeros_like(out_ref)

    base = (c * steps_per_core + g) * tile

    # In-kernel row gather: indices are SMEM scalars, tables live in VMEM.
    @pl.loop(0, tile)
    def _(b):
        u_buf[pl.ds(b, 1), :] = w_ref[pl.ds(u_idx_ref[base + b], 1), :]
        i_buf[pl.ds(b, 1), :] = h_ref[pl.ds(i_idx_ref[base + b], 1), :]
        j_buf[pl.ds(b, 1), :] = h_ref[pl.ds(j_idx_ref[base + b], 1), :]

    # Upcast (no-op for f32 tables) and do all VPU math in f32.
    u = u_buf[...].astype(jnp.float32)
    i = i_buf[...].astype(jnp.float32)
    j = j_buf[...].astype(jnp.float32)

    # Mask padded rows so they contribute 0 to both loss terms.
    row_id = base + lax.broadcasted_iota(jnp.int32, (tile, 1), 0)
    valid = (row_id < batch).astype(jnp.float32)                     # (tile, 1)

    # x_uij = <u, i - j>  (one multiply + one lane reduction).
    x_uij = jnp.sum(u * (i - j), axis=1, keepdims=True)              # (tile, 1)
    # Numerically stable logsigmoid(x) = min(x, 0) - log1p(exp(-|x|)).
    log_sig = jnp.minimum(x_uij, 0.0) - jnp.log1p(jnp.exp(-jnp.abs(x_uij)))
    # Fused L2 regularization: one lane reduction over u*u + i*i + j*j.
    reg = jnp.sum(u * u + i * i + j * j, axis=1, keepdims=True)      # (tile, 1)

    contrib = valid * (-log_sig + weight_decay * reg)                # (tile, 1)
    partial = jnp.sum(contrib, axis=0, keepdims=True)                # (1, 1)
    out_ref[...] += partial.reshape(1, 1, 1)


def bpr_loss(W, H, u_idx, i_idx, j_idx, weight_decay, *, tile=None, n_cores=2):
    """BPR forward loss with fused in-kernel gathers and a tiled reduction."""
    B = int(u_idx.shape[0])
    U, D = W.shape
    I, _ = H.shape

    # Tile sizing: multiple of 8 rows, capped so 3 x tile x D x 4B scratch stays
    # a few hundred KiB (comfortable even for v7x's 64 MiB VMEM).
    rows_per_core = (B + n_cores - 1) // n_cores
    if tile is None:
        tile = max(8, min(256, ((rows_per_core + 7) // 8) * 8))
    steps_per_core = max(1, (rows_per_core + tile - 1) // tile)
    padded = n_cores * steps_per_core * tile

    def pad_idx(idx):
        idx = idx.astype(jnp.int32)
        return jnp.pad(idx, (0, padded - B))

    u_p, i_p, j_p = pad_idx(u_idx), pad_idx(i_idx), pad_idx(j_idx)

    kernel = functools.partial(
        _bpr_kernel, batch=B, tile=tile, weight_decay=float(weight_decay)
    )

    # TODO(synk): for embedding tables too large for VMEM, switch W/H to
    # memory_space=pl.ANY and gather rows with manual double-buffered
    # pltpu.make_async_copy DMAs instead of keeping the tables resident.
    partials = pl.pallas_call(
        kernel,
        out_shape=jax.ShapeDtypeStruct((n_cores, 1, 1), jnp.float32),
        grid_spec=pltpu.PrefetchScalarGridSpec(
            num_scalar_prefetch=3,
            grid=(n_cores, steps_per_core),
            in_specs=[
                pl.BlockSpec((U, D), lambda c, g, *_: (0, 0)),   # W (whole)
                pl.BlockSpec((I, D), lambda c, g, *_: (0, 0)),   # H (whole)
            ],
            out_specs=pl.BlockSpec((1, 1, 1), lambda c, g, *_: (c, 0, 0)),
            scratch_shapes=[
                pltpu.VMEM((tile, D), W.dtype),
                pltpu.VMEM((tile, D), H.dtype),
                pltpu.VMEM((tile, D), H.dtype),
            ],
        ),
        compiler_params=pltpu.CompilerParams(
            dimension_semantics=("parallel", "arbitrary"),
        ),
    )(u_p, i_p, j_p, W, H)

    return jnp.sum(partials)


def _reference_bpr_loss(W, H, u_idx, i_idx, j_idx, weight_decay):
    u = W[u_idx, :]
    i = H[i_idx, :]
    j = H[j_idx, :]
    x_uij = jnp.sum(u * i, axis=1) - jnp.sum(u * j, axis=1)
    log_prob = jnp.sum(jax.nn.log_sigmoid(x_uij))
    reg = weight_decay * (jnp.sum(u ** 2) + jnp.sum(i ** 2) + jnp.sum(j ** 2))
    return -log_prob + reg


if __name__ == "__main__":
    key = jax.random.PRNGKey(0)
    k_w, k_h, k_u, k_i, k_j = jax.random.split(key, 5)

    user_size = 64
    item_size = 96
    dim = 128
    batch = 8
    weight_decay = 0.01

    # Deterministic xavier_normal_ init: std = sqrt(2 / (fan_in + fan_out))
    std_w = (2.0 / (user_size + dim)) ** 0.5
    std_h = (2.0 / (item_size + dim)) ** 0.5
    W = std_w * jax.random.normal(k_w, (user_size, dim), dtype=jnp.float32)
    H = std_h * jax.random.normal(k_h, (item_size, dim), dtype=jnp.float32)

    u = jax.random.randint(k_u, (batch,), 0, user_size, dtype=jnp.int32)
    i = jax.random.randint(k_i, (batch,), 0, item_size, dtype=jnp.int32)
    j = jax.random.randint(k_j, (batch,), 0, item_size, dtype=jnp.int32)

    loss = bpr_loss(W, H, u, i, j, weight_decay)
    jax.block_until_ready(loss)

    ref = _reference_bpr_loss(W, H, u, i, j, weight_decay)
    assert jnp.allclose(loss, ref, rtol=1e-5, atol=1e-4), (loss, ref)

    print("KERNEL_OK")
</pallas_src>

<mosaic_0001>
module attributes {stable_mosaic.version = 11 : i64} {
  func.func @_bpr_kernel(%arg0: i32, %arg1: i32, %arg2: memref<16xi32, #tpu.memory_space<smem>>, %arg3: memref<16xi32, #tpu.memory_space<smem>>, %arg4: memref<16xi32, #tpu.memory_space<smem>>, %arg5: memref<64x128xf32, #tpu.memory_space<vmem>>, %arg6: memref<96x128xf32, #tpu.memory_space<vmem>>, %arg7: memref<1x1x1xf32, #tpu.memory_space<vmem>>, %arg8: memref<8x128xf32, #tpu.memory_space<vmem>>, %arg9: memref<8x128xf32, #tpu.memory_space<vmem>>, %arg10: memref<8x128xf32, #tpu.memory_space<vmem>>) attributes {dimension_semantics = [#tpu.dimension_semantics<parallel>, #tpu.dimension_semantics<arbitrary>], iteration_bounds = array<i64: 2, 1>, scalar_prefetch = 3 : i64, scratch_operands = 3 : i64, tpu.core_type = #tpu.core_type<tc>, window_params = [{pipeline_mode = #tpu.pipeline_mode<synchronous>, transform_indices = @transform_0, window_bounds = array<i64: 64, 128>}, {pipeline_mode = #tpu.pipeline_mode<synchronous>, transform_indices = @transform_1, window_bounds = array<i64: 96, 128>}, {transform_indices = @transform_2, window_bounds = array<i64: 1, 1, 1>}]} {
    %c0_i32 = arith.constant 0 : i32
    %0 = arith.cmpi eq, %arg1, %c0_i32 : i32
    %1 = arith.extui %0 : i1 to i32
    %c0_i32_0 = arith.constant 0 : i32
    %2 = arith.cmpi ne, %1, %c0_i32_0 : i32
    scf.if %2 {
      %cst_23 = arith.constant 0.000000e+00 : f32
      %48 = vector.broadcast %cst_23 : f32 to vector<1x1x1xf32>
      %c0_24 = arith.constant 0 : index
      %c0_25 = arith.constant 0 : index
      %c0_26 = arith.constant 0 : index
      %49 = vector.load %arg7[%c0_24, %c0_25, %c0_26] : memref<1x1x1xf32, #tpu.memory_space<vmem>>, vector<1x1x1xf32>
      tpu.vector_store %arg7[%c0_24, %c0_25, %c0_26], %48 {strides = array<i32>} : memref<1x1x1xf32, #tpu.memory_space<vmem>>, vector<1x1x1xf32>,
    } else {
    }
    %c1_i32 = arith.constant 1 : i32
    %3 = arith.muli %arg0, %c1_i32 : i32
    %4 = arith.addi %3, %arg1 : i32
    %c8_i32 = arith.constant 8 : i32
    %5 = arith.muli %4, %c8_i32 : i32
    %c0_i32_1 = arith.constant 0 : i32
    %c8_i32_2 = arith.constant 8 : i32
    %6 = arith.addi %c0_i32_1, %c8_i32_2 : i32
    %c1_i32_3 = arith.constant 1 : i32
    scf.for %arg11 = %c0_i32_1 to %6 step %c1_i32_3  : i32 {
      %c1_i32_23 = arith.constant 1 : i32
      %48 = arith.muli %arg11, %c1_i32_23 : i32
      %c0_i32_24 = arith.constant 0 : i32
      %49 = arith.addi %c0_i32_24, %48 : i32
      %50 = arith.addi %5, %49 : i32
      %51 = arith.index_cast %50 : i32 to index
      %52 = memref.load %arg2[%51] : memref<16xi32, #tpu.memory_space<smem>>
      %53 = arith.index_cast %52 : i32 to index
      %c0_25 = arith.constant 0 : index
      %54 = vector.load %arg5[%53, %c0_25] : memref<64x128xf32, #tpu.memory_space<vmem>>, vector<1x128xf32>
      %55 = arith.index_cast %49 : i32 to index
      %c0_26 = arith.constant 0 : index
      %56 = vector.load %arg8[%55, %c0_26] : memref<8x128xf32, #tpu.memory_space<vmem>>, vector<1x128xf32>
      tpu.vector_store %arg8[%55, %c0_26], %54 {strides = array<i32>} : memref<8x128xf32, #tpu.memory_space<vmem>>, vector<1x128xf32>,
      %57 = arith.addi %5, %49 : i32
      %58 = arith.index_cast %57 : i32 to index
      %59 = memref.load %arg3[%58] : memref<16xi32, #tpu.memory_space<smem>>
      %60 = arith.index_cast %59 : i32 to index
      %c0_27 = arith.constant 0 : index
      %61 = vector.load %arg6[%60, %c0_27] : memref<96x128xf32, #tpu.memory_space<vmem>>, vector<1x128xf32>
      %62 = arith.index_cast %49 : i32 to index
      %c0_28 = arith.constant 0 : index
      %63 = vector.load %arg9[%62, %c0_28] : memref<8x128xf32, #tpu.memory_space<vmem>>, vector<1x128xf32>
      tpu.vector_store %arg9[%62, %c0_28], %61 {strides = array<i32>} : memref<8x128xf32, #tpu.memory_space<vmem>>, vector<1x128xf32>,
      %64 = arith.addi %5, %49 : i32
      %65 = arith.index_cast %64 : i32 to index
      %66 = memref.load %arg4[%65] : memref<16xi32, #tpu.memory_space<smem>>
      %67 = arith.index_cast %66 : i32 to index
      %c0_29 = arith.constant 0 : index
      %68 = vector.load %arg6[%67, %c0_29] : memref<96x128xf32, #tpu.memory_space<vmem>>, vector<1x128xf32>
      %69 = arith.index_cast %49 : i32 to index
      %c0_30 = arith.constant 0 : index
      %70 = vector.load %arg10[%69, %c0_30] : memref<8x128xf32, #tpu.memory_space<vmem>>, vector<1x128xf32>
      tpu.vector_store %arg10[%69, %c0_30], %68 {strides = array<i32>} : memref<8x128xf32, #tpu.memory_space<vmem>>, vector<1x128xf32>,
    }
    %c8_i32_4 = arith.constant 8 : i32
    %c0 = arith.constant 0 : index
    %c0_5 = arith.constant 0 : index
    %7 = vector.load %arg8[%c0, %c0_5] : memref<8x128xf32, #tpu.memory_space<vmem>>, vector<8x128xf32>
    %c0_6 = arith.constant 0 : index
    %c0_7 = arith.constant 0 : index
    %8 = vector.load %arg9[%c0_6, %c0_7] : memref<8x128xf32, #tpu.memory_space<vmem>>, vector<8x128xf32>
    %c0_8 = arith.constant 0 : index
    %c0_9 = arith.constant 0 : index
    %9 = vector.load %arg10[%c0_8, %c0_9] : memref<8x128xf32, #tpu.memory_space<vmem>>, vector<8x128xf32>
    %10 = tpu.iota {dimensions = array<i32: 0>} : vector<8x1xi32>
    %11 = vector.broadcast %5 : i32 to vector<8x1xi32>
    %12 = arith.addi %11, %10 : vector<8x1xi32>
    %c8_i32_10 = arith.constant 8 : i32
    %13 = vector.broadcast %c8_i32_10 : i32 to vector<8x1xi32>
    %14 = arith.cmpi slt, %12, %13 : vector<8x1xi32>
    %15 = arith.extui %14 : vector<8x1xi1> to vector<8x1xi32>
    %16 = arith.sitofp %15 : vector<8x1xi32> to vector<8x1xf32>
    %17 = arith.subf %8, %9 : vector<8x128xf32>
    %18 = arith.mulf %7, %17 : vector<8x128xf32>
    %cst = arith.constant dense<0.000000e+00> : vector<8xf32>
    %19 = vector.multi_reduction <add>, %18, %cst [1] : vector<8x128xf32> to vector<8xf32>
    %20 = vector.shape_cast %19 : vector<8xf32> to vector<8x1xf32>
    %cst_11 = arith.constant 0.000000e+00 : f32
    %21 = vector.broadcast %cst_11 : f32 to vector<8x1xf32>
    %22 = arith.minimumf %20, %21 : vector<8x1xf32>
    %23 = math.absf %20 : vector<8x1xf32>
    %cst_12 = arith.constant 0.000000e+00 : f32
    %24 = vector.broadcast %cst_12 : f32 to vector<8x1xf32>
    %25 = arith.subf %24, %23 : vector<8x1xf32>
    %26 = math.exp %25 : vector<8x1xf32>
    %27 = math.log1p %26 : vector<8x1xf32>
    %28 = arith.subf %22, %27 : vector<8x1xf32>
    %29 = arith.mulf %7, %7 : vector<8x128xf32>
    %30 = arith.mulf %8, %8 : vector<8x128xf32>
    %31 = arith.addf %29, %30 : vector<8x128xf32>
    %32 = arith.mulf %9, %9 : vector<8x128xf32>
    %33 = arith.addf %31, %32 : vector<8x128xf32>
    %cst_13 = arith.constant dense<0.000000e+00> : vector<8xf32>
    %34 = vector.multi_reduction <add>, %33, %cst_13 [1] : vector<8x128xf32> to vector<8xf32>
    %35 = vector.shape_cast %34 : vector<8xf32> to vector<8x1xf32>
    %cst_14 = arith.constant 0.000000e+00 : f32
    %36 = vector.broadcast %cst_14 : f32 to vector<8x1xf32>
    %37 = arith.subf %36, %28 : vector<8x1xf32>
    %cst_15 = arith.constant 0.00999999977 : f32
    %38 = vector.broadcast %cst_15 : f32 to vector<8x1xf32>
    %39 = arith.mulf %38, %35 : vector<8x1xf32>
    %40 = arith.addf %37, %39 : vector<8x1xf32>
    %41 = arith.mulf %16, %40 : vector<8x1xf32>
    %cst_16 = arith.constant dense<0.000000e+00> : vector<1xf32>
    %42 = vector.multi_reduction <add>, %41, %cst_16 [0] : vector<8x1xf32> to vector<1xf32>
    %43 = vector.shape_cast %42 : vector<1xf32> to vector<1x1xf32>
    %c0_17 = arith.constant 0 : index
    %c0_18 = arith.constant 0 : index
    %c0_19 = arith.constant 0 : index
    %44 = vector.load %arg7[%c0_17, %c0_18, %c0_19] : memref<1x1x1xf32, #tpu.memory_space<vmem>>, vector<1x1x1xf32>
    %45 = vector.shape_cast %43 : vector<1x1xf32> to vector<1x1x1xf32>
    %46 = arith.addf %44, %45 : vector<1x1x1xf32>
    %c0_20 = arith.constant 0 : index
    %c0_21 = arith.constant 0 : index
    %c0_22 = arith.constant 0 : index
    %47 = vector.load %arg7[%c0_20, %c0_21, %c0_22] : memref<1x1x1xf32, #tpu.memory_space<vmem>>, vector<1x1x1xf32>
    tpu.vector_store %arg7[%c0_20, %c0_21, %c0_22], %46 {strides = array<i32>} : memref<1x1x1xf32, #tpu.memory_space<vmem>>, vector<1x1x1xf32>,
    return
  }
  func.func @transform_0(%arg0: i32, %arg1: i32, %arg2: memref<16xi32, #tpu.memory_space<smem>>, %arg3: memref<16xi32, #tpu.memory_space<smem>>, %arg4: memref<16xi32, #tpu.memory_space<smem>>) -> (i32, i32) {
    %c0_i32 = arith.constant 0 : i32
    %c0_i32_0 = arith.constant 0 : i32
    %c0_i32_1 = arith.constant 0 : i32
    return %c0_i32, %c0_i32_0 : i32, i32
  }
  func.func @transform_1(%arg0: i32, %arg1: i32, %arg2: memref<16xi32, #tpu.memory_space<smem>>, %arg3: memref<16xi32, #tpu.memory_space<smem>>, %arg4: memref<16xi32, #tpu.memory_space<smem>>) -> (i32, i32) {
    %c0_i32 = arith.constant 0 : i32
    %c0_i32_0 = arith.constant 0 : i32
    %c0_i32_1 = arith.constant 0 : i32
    return %c0_i32, %c0_i32_0 : i32, i32
  }
  func.func @transform_2(%arg0: i32, %arg1: i32, %arg2: memref<16xi32, #tpu.memory_space<smem>>, %arg3: memref<16xi32, #tpu.memory_space<smem>>, %arg4: memref<16xi32, #tpu.memory_space<smem>>) -> (i32, i32, i32) {
    %c0_i32 = arith.constant 0 : i32
    %c0_i32_0 = arith.constant 0 : i32
    %c0_i32_1 = arith.constant 0 : i32
    return %arg0, %c0_i32, %c0_i32_0 : i32, i32, i32
  }
}

</mosaic_0001>

<llo_original>
// kernel: tpu_custom_call.1
$region0: #{tpu_custom_call.1}
  #allocation0 [shape = 'u32[]', space=smem, size = 0x4, offset = 0x4, fixed_abs, tag = 'smem constant byte address 0x4 - core index']
  #allocation1 [shape = 'u32[144,128]{1,0:T(1,128)}', space=vmem, size = 0x12000, scoped, tag = 'internal scratch']
  #allocation2 [shape = 'f32[8,128]{1,0:T(8,128)}', space=vmem, size = 0x1000, scoped, tag = 'scratch operand']
  #allocation3 [shape = 'f32[8,128]{1,0:T(8,128)}', space=vmem, size = 0x1000, scoped, tag = 'scratch operand']
  #allocation4 [shape = 'f32[8,128]{1,0:T(8,128)}', space=vmem, size = 0x1000, scoped, tag = 'scratch operand']
  #allocation5 [shape = 's32[1]{0}', space=sflag, size = 0x4, scoped, tag = 'scoped memory for tpu_custom_call.1']
  #allocation6 [shape = 'u8[512]{0}', space=smem, size = 0x200, scoped, tag = 'prefetched SMEM operand 0']
  #allocation7 [shape = 'u8[512]{0}', space=smem, size = 0x200, scoped, tag = 'prefetched SMEM operand 1']
  #allocation8 [shape = 'u8[512]{0}', space=smem, size = 0x200, scoped, tag = 'prefetched SMEM operand 2']
  %s0 = inlined_call_operand.hbm [shape: s32[16], index: 0, kind: input, shape index: {}]
  %s1 = inlined_call_operand.vmem [shape: s32[16], index: 1, kind: input, shape index: {}]
  %s2 = inlined_call_operand.vmem [shape: s32[16], index: 2, kind: input, shape index: {}]
  %s3 = inlined_call_operand.hbm [shape: f32[64,128], index: 3, kind: input, shape index: {}]
  %s4 = inlined_call_operand.hbm [shape: f32[96,128], index: 4, kind: input, shape index: {}]
  %s5 = inlined_call_operand.vmem [shape: f32[2,1,1], index: 5, kind: output, shape index: {}]
  %s6 = sld [smem:[#allocation0]]
  $region60: #{tpu_custom_call.1} parent=0
    _
  %s8 = ssub.s32 1, %s6
  %s9 = scalar_select 0, %s8, %s6
  %11 = dma.hbm_to_smem %s0, 16, [#allocation6], [#allocation5]
  %s12 = sshll.u32 %s1, 4
  %s13 = int_to_ptr.vmem [resolvable:$true] %s12
  %15 = dma.vmem_to_smem %s13, 16, [#allocation7], [#allocation5]
  %s16 = sshll.u32 %s2, 4
  %s17 = int_to_ptr.vmem [resolvable:$true] %s16
  %19 = dma.vmem_to_smem %s17, 16, [#allocation8], [#allocation5]
  %20 = dma.done [#allocation5], 48
  %21 = sfence
  $region1: #{tpu_custom_call.1} parent=0
    #allocation9 [shape = 'u8[32768]{0}', space=vmem, size = 0x8000, scoped, tag = 'input window, operand 3, single buffered']
    #allocation10 [shape = 's32[2]{0}', space=sflag, size = 0x8, scoped, tag = 'scoped memory for tpu_custom_call.1']
    #allocation11 [shape = 'u8[49152]{0}', space=vmem, size = 0xc000, scoped, tag = 'input window, operand 4, single buffered']
    #allocation12 [shape = 's32[1]{0}', space=sflag, size = 0x4, scoped, tag = 'scoped memory for tpu_custom_call.1']
    %22 = vsyncpa [#allocation10], 0
    %23 = vsyncpa [#allocation12], 0
    loop: start=0, step=1, limit=4
    $region2: #{tpu_custom_call.1} parent=1 // loop_pre_header
      _
    $region3: #{tpu_custom_call.1} parent=1 // loop_header
      %s25 = sphi 0, %s29
      %p26 = scmp.ge.s32.totalorder %s25, 4
      %s32 = sphi 0, %s44
      %s33 = sphi 0, %s40
      %s34 = sphi 0, %s32
      %s35 = sphi 0, %s33
      %s36 = sphi 0, %s34
      %s37 = sphi 0, %s35
      %s45 = sphi 0, %s45
      %s47 = sphi 0, %s45
      %s48 = sphi 0, %s47
      %s62 = sphi 0, %s48
      %s66 = sphi 0, %s66
      %s68 = sphi 0, %s66
      %s69 = sphi 0, %s68
      %s83 = sphi 0, %s69
      %s89 = sphi 0, %s91
      %s92 = sphi 0, %s89
      %s93 = sphi 0, %s92
      %s109 = sphi 0, %s93
    $region4: #{tpu_custom_call.1} parent=1 // loop_header_branch
      %28 = sbr.rel (%p26) target = $region8
    $region5: #{tpu_custom_call.1} parent=1 // loop_body
      %s30 = ssub.s32 %s25, 1
      %s31 = ssub.s32 %s25, 2
      %s38 = sadd.s32 1, %s33
      %p39 = scmp.ge.s32.totalorder %s38, 1
      %s40 = scalar_select %p39, 0, %s38
      %s41 = sadd.s32 1, %s32
      %s42 = scalar_select %p39, %s41, %s32
      %p43 = scmp.ge.s32.totalorder %s42, 2
      %s44 = scalar_select %p43, 0, %s42
      %s46 = sadd.s32 %s45, 1
      %p49 = scmp.eq.s32.totalorder %s25, 1
      %p50 = scmp.ne.s32.totalorder %s45, %s47
      %p51 = scmp.eq.s32.totalorder %s25, 0
      %p52 = por %p50, %p51
      %p53 = scmp.ne.s32.totalorder %s45, %s47
      %p54 = scmp.eq.s32.totalorder %s30, 1
      %p55 = por %p53, %p54
      %p56 = scmp.ne.s32.totalorder %s47, %s48
      %p57 = scmp.eq.s32.totalorder %s30, 0
      %p58 = por %p56, %p57
      %p59 = scmp.ne.s32.totalorder %s47, %s48
      %p60 = scmp.eq.s32.totalorder %s31, 1
      %p61 = por %p59, %p60
      %p63 = scmp.ne.s32.totalorder %s48, %s62
      %p64 = scmp.eq.s32.totalorder %s31, 0
      %p65 = por %p63, %p64
      %s67 = sadd.s32 %s66, 1
      %p70 = scmp.eq.s32.totalorder %s25, 1
      %p71 = scmp.ne.s32.totalorder %s66, %s68
      %p72 = scmp.eq.s32.totalorder %s25, 0
      %p73 = por %p71, %p72
      %p74 = scmp.ne.s32.totalorder %s66, %s68
      %p75 = scmp.eq.s32.totalorder %s30, 1
      %p76 = por %p74, %p75
      %p77 = scmp.ne.s32.totalorder %s68, %s69
      %p78 = scmp.eq.s32.totalorder %s30, 0
      %p79 = por %p77, %p78
      %p80 = scmp.ne.s32.totalorder %s68, %s69
      %p81 = scmp.eq.s32.totalorder %s31, 1
      %p82 = por %p80, %p81
      %p84 = scmp.ne.s32.totalorder %s69, %s83
      %p85 = scmp.eq.s32.totalorder %s31, 0
      %p86 = por %p84, %p85
      %s87 = ssub.s32 %s32, %s44
      %p88 = scmp.eq.s32.totalorder %s87, 0
      %s90 = sadd.s32 %s89, 1
      %s91 = scalar_select %p88, %s89, %s90
      %p94 = pneg %p88
      %p95 = scmp.eq.s32.totalorder %s25, 1
      %p96 = por %p94, %p95
      %p97 = scmp.ne.s32.totalorder %s89, %s92
      %p98 = scmp.eq.s32.totalorder %s25, 0
      %p99 = por %p97, %p98
      %p100 = scmp.ne.s32.totalorder %s89, %s92
      %p101 = scmp.eq.s32.totalorder %s30, 1
      %p102 = por %p100, %p101
      %p103 = scmp.ne.s32.totalorder %s92, %s93
      %p104 = scmp.eq.s32.totalorder %s30, 0
      %p105 = por %p103, %p104
      %p106 = scmp.ne.s32.totalorder %s92, %s93
      %p107 = scmp.eq.s32.totalorder %s31, 1
      %p108 = por %p106, %p107
      %p110 = scmp.ne.s32.totalorder %s93, %s109
      %p111 = scmp.eq.s32.totalorder %s31, 0
      %p112 = por %p110, %p111
      %p113 = scmp.le.s32.totalorder 1, %s25
      %p114 = scmp.lt.s32.totalorder %s25, 3
      %p115 = pnand %p113, %p114
      %p116 = pneg %p115
      // Predicated region
      $region9: #{tpu_custom_call.1} parent=5 // pred_check
        _
      $region10: #{tpu_custom_call.1} parent=5 // pred_check_branch
        %118 = sbr.rel (%p115) target = $region12
      $region11: #{tpu_custom_call.1} parent=5 // pred_region
        %s119 = ssub.s32 %s25, 1
        // Predicated region
        $region13: #{tpu_custom_call.1} parent=11 // pred_check
          %p120 = pneg %p58
        $region14: #{tpu_custom_call.1} parent=11 // pred_check_branch
          %122 = sbr.rel (%p120) target = $region16
        $region15: #{tpu_custom_call.1} parent=11 // pred_region
          %s124 = ssub.s32 1024, 1024
          %125 = vsyncadd [#allocation10], %s124
          %s126 = sshll.u32 [#allocation9], 4
          %s127 = int_to_ptr.vmem [resolvable:$true] %s126
          %132 = dma.hbm_to_vmem [thread:$0]  %s3, 1024, %s127, [#allocation10], 128, 128, 8
        $region16: #{tpu_custom_call.1} parent=11 // pred_fallthru
          _
        // Predicated region
        $region17: #{tpu_custom_call.1} parent=11 // pred_check
          %p133 = pneg %p79
        $region18: #{tpu_custom_call.1} parent=11 // pred_check_branch
          %135 = sbr.rel (%p133) target = $region20
        $region19: #{tpu_custom_call.1} parent=11 // pred_region
          %s137 = ssub.s32 1536, 1536
          %138 = vsyncadd [#allocation12], %s137
          %s139 = sshll.u32 [#allocation11], 4
          %s140 = int_to_ptr.vmem [resolvable:$true] %s139
          %145 = dma.hbm_to_vmem [thread:$0]  %s4, 1536, %s140, [#allocation12], 128, 128, 8
        $region20: #{tpu_custom_call.1} parent=11 // pred_fallthru
          _
      $region12: #{tpu_custom_call.1} parent=5 // pred_fallthru
        _
      %p146 = scmp.lt.s32.totalorder %s25, 2
      // Predicated region
      $region21: #{tpu_custom_call.1} parent=5 // pred_check
        %p147 = pneg %p146
      $region22: #{tpu_custom_call.1} parent=5 // pred_check_branch
        %149 = sbr.rel (%p147) target = $region24
      $region23: #{tpu_custom_call.1} parent=5 // pred_region
        _
      $region24: #{tpu_custom_call.1} parent=5 // pred_fallthru
        _
      %p150 = scmp.le.s32.totalorder 1, %s25
      %p151 = scmp.lt.s32.totalorder %s25, 3
      %p152 = pnand %p150, %p151
      %p153 = pneg %p152
      // Predicated region
      $region25: #{tpu_custom_call.1} parent=5 // pred_check
        _
      $region26: #{tpu_custom_call.1} parent=5 // pred_check_branch
        %155 = sbr.rel (%p152) target = $region28
      $region27: #{tpu_custom_call.1} parent=5 // pred_region
        %s156 = ssub.s32 %s25, 1
        // Predicated region
        $region29: #{tpu_custom_call.1} parent=27 // pred_check
          %p157 = pneg %p58
        $region30: #{tpu_custom_call.1} parent=27 // pred_check_branch
          %159 = sbr.rel (%p157) target = $region32
        $region31: #{tpu_custom_call.1} parent=27 // pred_region
          %160 = dma.done [#allocation10], 1024
        $region32: #{tpu_custom_call.1} parent=27 // pred_fallthru
          _
        // Predicated region
        $region33: #{tpu_custom_call.1} parent=27 // pred_check
          %p161 = pneg %p79
        $region34: #{tpu_custom_call.1} parent=27 // pred_check_branch
          %163 = sbr.rel (%p161) target = $region36
        $region35: #{tpu_custom_call.1} parent=27 // pred_region
          %164 = dma.done [#allocation12], 1536
        $region36: #{tpu_custom_call.1} parent=27 // pred_fallthru
          _
        %p165 = pneg %p58
        %p166 = pneg %p55
        %p167 = pneg %p79
        %p168 = pneg %p76
        %p169 = pneg %p105
        %p170 = pneg %p102
        %p171 = scmp.lt.s32.totalorder %s34, 1
        %s172 = scalar_select %p171, %s34, 1
        %s173 = scalar_lea.vmem %s5, %s172
        %p174 = scmp.lt.s32.totalorder %s34, 1
        %s175 = scalar_select %p174, %s34, 1
        %s176 = scalar_lea.vmem %s5, %s175
        %p177 = scmp.eq.s32.totalorder %s35, 0
        // Predicated region
        $region37: #{tpu_custom_call.1} parent=27 // pred_check
          %p178 = pneg %p177
        $region38: #{tpu_custom_call.1} parent=27 // pred_check_branch
          %180 = sbr.rel (%p178) target = $region40
        $region39: #{tpu_custom_call.1} parent=27 // pred_region
          %vm181 = vcmask 0
          %182 = vst.msk [vmem:[%s176] sm:$0x1] %vm181, 0.0
        $region40: #{tpu_custom_call.1} parent=27 // pred_fallthru
          _
        %s183 = sadd.s32 %s34, %s35
        %s184 = smul.u32 %s183, 8
        loop: start=0, step=1, limit=8
        $region41: #{tpu_custom_call.1} parent=27 // loop_pre_header
          _
        $region42: #{tpu_custom_call.1} parent=27 // loop_header
          %s186 = sphi 0, %s190
          %p187 = scmp.ge.s32.totalorder %s186, 8
        $region43: #{tpu_custom_call.1} parent=27 // loop_header_branch
          %189 = sbr.rel (%p187) target = $region47
        $region44: #{tpu_custom_call.1} parent=27 // loop_body
          %s191 = sadd.s32 %s184, %s186
          %s192 = sld [smem:[#allocation6 + %s191]]
          %s193 = scalar_lea.vmem [#allocation9], %s192
          %v194 = vld [vmem:[%s193] sm:$0x1]
          %s195 = scalar_lea.vmem [#allocation2], %s186
          %196 = vst [vmem:[%s195] sm:$0x1] %v194
          %s197 = sld [smem:[#allocation7 + %s191]]
          %s198 = scalar_lea.vmem [#allocation11], %s197
          %v199 = vld [vmem:[%s198] sm:$0x1]
          %s200 = scalar_lea.vmem [#allocation3], %s186
          %201 = vst [vmem:[%s200] sm:$0x1] %v199
          %s202 = sld [smem:[#allocation8 + %s191]]
          %s203 = scalar_lea.vmem [#allocation11], %s202
          %v204 = vld [vmem:[%s203] sm:$0x1]
          %s205 = scalar_lea.vmem [#allocation4], %s186
          %206 = vst [vmem:[%s205] sm:$0x1] %v204
        $region45: #{tpu_custom_call.1} parent=27 // loop_footer
          %s190 = sadd.s32 1, %s186
        $region46: #{tpu_custom_call.1} parent=27 // loop_footer_branch
          %185 = sbr.rel target = $region42
        $region47: #{tpu_custom_call.1} parent=27 // loop_exit
          _
        %v207 = vld [vmem:[#allocation2] sm:$0xff]
        %v208 = vld [vmem:[#allocation3] sm:$0xff]
        %v209 = vld [vmem:[#allocation4] sm:$0xff]
        %v210 = vlaneseq
        %v211 = vshrl.u32 %v210, 7
        %v212 = vstv %s184
        %v213 = vadd.s32 %v212, %v211
        %vm214 = vcmp.lt.s32.totalorder %v213, 8
        %v215 = vsel %vm214, 1, 0
        %v216 = vcvt.s32.f32 %v215
        %v217 = vsub.f32 %v208, %v209
        %v218 = vmul.f32 %v207, %v217
        %219 = vadd.xlane.f32.xlu0 %v218
        %v220 = vpop.xlane.xlu0 %219
        %v221 = vmin.f32 %v220, 0.0
        %v222 = vand.u32 2147483647, %v220
        %v223 = vsub.f32 0.0, %v222
        %v224 = vmul.f32 %v223, 1.442695
        %v225 = vpow.pop %v224
        %v226 = vadd.f32 %v225, 1.0
        %v227 = vlog2.pop %v226
        %v228 = vmul.f32 %v227, 0.6931472
        %v229 = vmul.f32 -0.5, %v225
        %v230 = vadd.f32 %v229, 1.0
        %v231 = vmul.f32 %v230, %v225
        %v232 = vand.u32 2147483647, %v225
        %vm233 = vcmp.lt.f32.partialorder %v232, 0.0004427343
        %v234 = vsel %vm233, %v231, %v228
        %v235 = vsub.f32 %v221, %v234
        %v236 = vmul.f32 %v207, %v207
        %v237 = vmul.f32 %v208, %v208
        %v238 = vadd.f32 %v236, %v237
        %v239 = vmul.f32 %v209, %v209
        %v240 = vadd.f32 %v238, %v239
        %241 = vadd.xlane.f32.xlu0 %v240
        %v242 = vpop.xlane.xlu0 %241
        %v243 = vsub.f32 0.0, %v235
        %v244 = vmul.f32 %v242, 0.01
        %v245 = vadd.f32 %v243, %v244
        %v246 = vmul.f32 %v216, %v245
        %v247 = vrot.slane %v246, 4
        %v248 = vadd.f32 %v246, %v247
        %v249 = vrot.slane %v248, 2
        %v250 = vadd.f32 %v248, %v249
        %v251 = vrot.slane %v250, 1
        %v252 = vadd.f32 %v250, %v251
        %v253 = vld [vmem:[%s176] sm:$0x1]
        %v254 = vadd.f32 %v253, %v252
        %vm255 = vcmask 0
        %256 = vst.msk [vmem:[%s176] sm:$0x1] %vm255, %v254
        %p257 = scmp.lt.s32.totalorder %s34, 1
        %s258 = scalar_select %p257, %s34, 1
        %s259 = scalar_lea.vmem %s5, %s258
        // Predicated region
        $region48: #{tpu_custom_call.1} parent=27 // pred_check
          %p260 = pneg %p102
        $region49: #{tpu_custom_call.1} parent=27 // pred_check_branch
          %262 = sbr.rel (%p260) target = $region51
        $region50: #{tpu_custom_call.1} parent=27 // pred_region
          _
        $region51: #{tpu_custom_call.1} parent=27 // pred_fallthru
          _
      $region28: #{tpu_custom_call.1} parent=5 // pred_fallthru
        _
      %p263 = scmp.le.s32.totalorder 2, %s25
      // Predicated region
      $region52: #{tpu_custom_call.1} parent=5 // pred_check
        %p264 = pneg %p263
      $region53: #{tpu_custom_call.1} parent=5 // pred_check_branch
        %266 = sbr.rel (%p264) target = $region55
      $region54: #{tpu_custom_call.1} parent=5 // pred_region
        %s267 = ssub.s32 %s25, 2
        // Predicated region
        $region56: #{tpu_custom_call.1} parent=54 // pred_check
          %p268 = pneg %p108
        $region57: #{tpu_custom_call.1} parent=54 // pred_check_branch
          %270 = sbr.rel (%p268) target = $region59
        $region58: #{tpu_custom_call.1} parent=54 // pred_region
          %p271 = scmp.lt.s32.totalorder %s36, 1
          %s272 = scalar_select %p271, %s36, 1
          %s273 = scalar_lea.vmem %s5, %s272
        $region59: #{tpu_custom_call.1} parent=54 // pred_fallthru
          _
      $region55: #{tpu_custom_call.1} parent=5 // pred_fallthru
        _
    $region6: #{tpu_custom_call.1} parent=1 // loop_footer
      %s29 = sadd.s32 1, %s25
    $region7: #{tpu_custom_call.1} parent=1 // loop_footer_branch
      %24 = sbr.rel target = $region3
    $region8: #{tpu_custom_call.1} parent=1 // loop_exit
      _
    %274 = vsyncpa [#allocation10], 1
    %s275 = scalar_lea.sflag [#allocation10], 1
    %276 = vsyncpa %s275, 1
    %277 = vsyncpa [#allocation12], 1

</llo_original>
